<compile_context>
chip_gen: v7x
topology: tpu7x:2x2x1
jax: 0.10.0
libtpu: 0.0.40
codegen_flags: <defaults>
</compile_context>

<pallas_src>
import jax
import jax.numpy as jnp
import numpy as np
from jax import lax
from jax.experimental import pallas as pl
from jax.experimental.pallas import tpu as pltpu

_NEG_SLOPE = 0.01       # F.leaky_relu default negative_slope
_DIAG_INF = 1.0e8       # eyes_like * 100000000.0


def _dot_graph_kernel(x_ref, o_ref):
    # x_ref: (1, N, D) block for one batch element; o_ref: (1, N, N).
    x = x_ref[0].astype(jnp.float32)                                  # (N, D)
    N = x.shape[0]

    # Adj = x @ x.T : contract the feature dim of both operands directly on
    # the MXU — no explicit transpose needed.
    s = lax.dot_general(x, x, (((1,), (1,)), ((), ())),
                        preferred_element_type=jnp.float32)           # (N, N)

    # Diagonal mask built in-register from 2-D iotas (never hits HBM).
    rows = lax.broadcasted_iota(jnp.int32, (N, N), 0)
    cols = lax.broadcasted_iota(jnp.int32, (N, N), 1)
    on_diag = rows == cols

    # Adj - 1e8 * I
    s = jnp.where(on_diag, s - _DIAG_INF, s)

    # LeakyReLU (default slope 0.01)
    s = jnp.where(s >= 0.0, s, _NEG_SLOPE * s)

    # Numerically stable softmax over the last dim (rows).
    m = jnp.max(s, axis=-1, keepdims=True)
    p = jnp.exp(s - m)
    denom = jnp.sum(p, axis=-1, keepdims=True)
    adj = p / denom

    # + I
    adj = jnp.where(on_diag, adj + 1.0, adj)

    o_ref[0, :, :] = adj.astype(o_ref.dtype)


def dot_graph_construction(node_features):
    """node_features: (bs, N, D). Returns Adj: (bs, N, N) float32."""
    bs, N, D = node_features.shape
    return pl.pallas_call(
        _dot_graph_kernel,
        out_shape=jax.ShapeDtypeStruct((bs, N, N), jnp.float32),
        grid=(bs,),
        in_specs=[pl.BlockSpec((1, N, D), lambda b: (b, 0, 0))],
        out_specs=pl.BlockSpec((1, N, N), lambda b: (b, 0, 0)),
        compiler_params=pltpu.CompilerParams(
            dimension_semantics=("parallel",)),
    )(node_features)


def reference_forward(node_features):
    """Pure-JAX mirror of the PyTorch forward."""
    bs, N, D = node_features.shape
    adj = jnp.einsum('bnd,bmd->bnm', node_features, node_features,
                     precision=lax.Precision.HIGHEST)
    eye = jnp.eye(N, dtype=jnp.float32)[None]
    adj = adj - eye * _DIAG_INF
    adj = jnp.where(adj >= 0.0, adj, _NEG_SLOPE * adj)
    adj = jax.nn.softmax(adj, axis=-1)
    return adj + eye


if __name__ == "__main__":
    bs, N, D = 2, 16, 8
    key = jax.random.PRNGKey(0)
    node_features = 0.5 * jax.random.normal(key, (bs, N, D), jnp.float32)

    out = dot_graph_construction(node_features)
    out = jax.block_until_ready(out)

    ref = reference_forward(node_features)
    np.testing.assert_allclose(np.asarray(out), np.asarray(ref),
                               rtol=1e-4, atol=1e-4)
    assert out.shape == (bs, N, N), out.shape
    # Each row = softmax row (sums to 1) + identity entry (adds 1) => 2.
    np.testing.assert_allclose(np.asarray(out).sum(-1),
                               np.full((bs, N), 2.0), rtol=1e-4, atol=1e-4)

    print("KERNEL_OK")
</pallas_src>

<mosaic_0001>
module attributes {stable_mosaic.version = 11 : i64} {
  func.func @_dot_graph_kernel(%arg0: i32, %arg1: memref<1x16x8xf32, #tpu.memory_space<vmem>>, %arg2: memref<1x16x16xf32, #tpu.memory_space<vmem>>) attributes {dimension_semantics = [#tpu.dimension_semantics<parallel>], iteration_bounds = array<i64: 2>, scalar_prefetch = 0 : i64, scratch_operands = 0 : i64, tpu.core_type = #tpu.core_type<tc>, window_params = [{transform_indices = @transform_0, window_bounds = array<i64: 1, 16, 8>}, {transform_indices = @transform_1, window_bounds = array<i64: 1, 16, 16>}]} {
    %c0 = arith.constant 0 : index
    %c0_0 = arith.constant 0 : index
    %c0_1 = arith.constant 0 : index
    %0 = vector.load %arg1[%c0, %c0_0, %c0_1] : memref<1x16x8xf32, #tpu.memory_space<vmem>>, vector<1x16x8xf32>
    %1 = vector.shape_cast %0 : vector<1x16x8xf32> to vector<16x8xf32>
    %cst = arith.constant dense<0.000000e+00> : vector<16x16xf32>
    %2 = tpu.matmul %1, %1, %cst {dimension_numbers = #tpu.dot_dimension_numbers<[1], [1], [0], [0], [0, 0, 1, 0], [], []>} : vector<16x8xf32>, vector<16x8xf32>, vector<16x16xf32> -> vector<16x16xf32>
    %3 = tpu.iota {dimensions = array<i32: 0>} : vector<16x16xi32>
    %4 = tpu.iota {dimensions = array<i32: 1>} : vector<16x16xi32>
    %5 = arith.cmpi eq, %3, %4 : vector<16x16xi32>
    %cst_2 = arith.constant 1.000000e+08 : f32
    %6 = vector.broadcast %cst_2 : f32 to vector<16x16xf32>
    %7 = arith.subf %2, %6 : vector<16x16xf32>
    %8 = arith.select %5, %7, %2 : vector<16x16xi1>, vector<16x16xf32>
    %cst_3 = arith.constant 0.000000e+00 : f32
    %9 = vector.broadcast %cst_3 : f32 to vector<16x16xf32>
    %10 = arith.cmpf oge, %8, %9 : vector<16x16xf32>
    %cst_4 = arith.constant 0.00999999977 : f32
    %11 = vector.broadcast %cst_4 : f32 to vector<16x16xf32>
    %12 = arith.mulf %11, %8 : vector<16x16xf32>
    %13 = arith.select %10, %8, %12 : vector<16x16xi1>, vector<16x16xf32>
    %cst_5 = arith.constant dense<0xFF800000> : vector<16xf32>
    %14 = vector.multi_reduction <maximumf>, %13, %cst_5 [1] : vector<16x16xf32> to vector<16xf32>
    %15 = vector.shape_cast %14 : vector<16xf32> to vector<16x1xf32>
    %16 = vector.broadcast %15 : vector<16x1xf32> to vector<16x16xf32>
    %17 = arith.subf %13, %16 : vector<16x16xf32>
    %18 = math.exp %17 : vector<16x16xf32>
    %cst_6 = arith.constant dense<0.000000e+00> : vector<16xf32>
    %19 = vector.multi_reduction <add>, %18, %cst_6 [1] : vector<16x16xf32> to vector<16xf32>
    %20 = vector.shape_cast %19 : vector<16xf32> to vector<16x1xf32>
    %21 = vector.broadcast %20 : vector<16x1xf32> to vector<16x16xf32>
    %22 = arith.divf %18, %21 : vector<16x16xf32>
    %cst_7 = arith.constant 1.000000e+00 : f32
    %23 = vector.broadcast %cst_7 : f32 to vector<16x16xf32>
    %24 = arith.addf %22, %23 : vector<16x16xf32>
    %25 = arith.select %5, %24, %22 : vector<16x16xi1>, vector<16x16xf32>
    %c0_8 = arith.constant 0 : index
    %c0_9 = arith.constant 0 : index
    %c0_10 = arith.constant 0 : index
    %26 = vector.load %arg2[%c0_8, %c0_9, %c0_10] : memref<1x16x16xf32, #tpu.memory_space<vmem>>, vector<1x16x16xf32>
    %27 = vector.shape_cast %26 : vector<1x16x16xf32> to vector<16x16xf32>
    %28 = vector.shape_cast %25 : vector<16x16xf32> to vector<1x16x16xf32>
    tpu.vector_store %arg2[%c0_8, %c0_9, %c0_10], %28 {strides = array<i32>} : memref<1x16x16xf32, #tpu.memory_space<vmem>>, vector<1x16x16xf32>,
    return
  }
  func.func @transform_0(%arg0: i32) -> (i32, i32, i32) {
    %c0_i32 = arith.constant 0 : i32
    %c0_i32_0 = arith.constant 0 : i32
    %c0_i32_1 = arith.constant 0 : i32
    return %arg0, %c0_i32, %c0_i32_0 : i32, i32, i32
  }
  func.func @transform_1(%arg0: i32) -> (i32, i32, i32) {
    %c0_i32 = arith.constant 0 : i32
    %c0_i32_0 = arith.constant 0 : i32
    %c0_i32_1 = arith.constant 0 : i32
    return %arg0, %c0_i32, %c0_i32_0 : i32, i32, i32
  }
}

</mosaic_0001>

<llo_original>
// kernel: tpu_custom_call.1
$region0: #{tpu_custom_call.1}
  #allocation0 [shape = 'u32[]', space=smem, size = 0x4, offset = 0x4, fixed_abs, tag = 'smem constant byte address 0x4 - core index']
  #allocation1 [shape = 'u32[144,128]{1,0:T(1,128)}', space=vmem, size = 0x12000, scoped, tag = 'internal scratch']
  %s0 = inlined_call_operand.vmem [shape: f32[2,16,8], index: 0, kind: input, shape index: {}]
  %s1 = inlined_call_operand.hbm [shape: f32[2,16,16], index: 1, kind: output, shape index: {}]
  %s2 = sld [smem:[#allocation0]]
  $region37: #{tpu_custom_call.1} parent=0
    _
  %s4 = ssub.s32 1, %s2
  %s5 = scalar_select 0, %s4, %s2
  $region1: #{tpu_custom_call.1} parent=0
    #allocation2 [shape = 'u8[16384]{0}', space=vmem, size = 0x4000, scoped, tag = 'output window, operand 0']
    #allocation3 [shape = 's32[2]{0}', space=sflag, size = 0x8, scoped, tag = 'scoped memory for tpu_custom_call.1']
    %6 = vsyncpa [#allocation3], 0
    %s7 = scalar_lea.sflag [#allocation3], 1
    %8 = vsyncpa %s7, 0
    loop: start=0, step=1, limit=4
    $region2: #{tpu_custom_call.1} parent=1 // loop_pre_header
      _
    $region3: #{tpu_custom_call.1} parent=1 // loop_header
      %s10 = sphi 0, %s14
      %p11 = scmp.ge.s32.totalorder %s10, 4
      %s20 = sphi 0, %s22
      %s23 = sphi 0, %s20
      %s24 = sphi 0, %s23
      %s40 = sphi 0, %s24
      %s46 = sphi 0, %s48
      %s49 = sphi 0, %s46
      %s50 = sphi 0, %s49
      %s66 = sphi 0, %s50
    $region4: #{tpu_custom_call.1} parent=1 // loop_header_branch
      %13 = sbr.rel (%p11) target = $region8
    $region5: #{tpu_custom_call.1} parent=1 // loop_body
      %s15 = ssub.s32 %s10, 1
      %s16 = ssub.s32 %s10, 2
      %s17 = sadd.s32 %s10, 1
      %s18 = ssub.s32 %s10, %s17
      %p19 = scmp.eq.s32.totalorder %s18, 0
      %s21 = sadd.s32 %s20, 1
      %s22 = scalar_select %p19, %s20, %s21
      %p25 = pneg %p19
      %p26 = scmp.eq.s32.totalorder %s10, 1
      %p27 = por %p25, %p26
      %p28 = scmp.ne.s32.totalorder %s20, %s23
      %p29 = scmp.eq.s32.totalorder %s10, 0
      %p30 = por %p28, %p29
      %p31 = scmp.ne.s32.totalorder %s20, %s23
      %p32 = scmp.eq.s32.totalorder %s15, 1
      %p33 = por %p31, %p32
      %p34 = scmp.ne.s32.totalorder %s23, %s24
      %p35 = scmp.eq.s32.totalorder %s15, 0
      %p36 = por %p34, %p35
      %p37 = scmp.ne.s32.totalorder %s23, %s24
      %p38 = scmp.eq.s32.totalorder %s16, 1
      %p39 = por %p37, %p38
      %p41 = scmp.ne.s32.totalorder %s24, %s40
      %p42 = scmp.eq.s32.totalorder %s16, 0
      %p43 = por %p41, %p42
      %s44 = ssub.s32 %s10, %s17
      %p45 = scmp.eq.s32.totalorder %s44, 0
      %s47 = sadd.s32 %s46, 1
      %s48 = scalar_select %p45, %s46, %s47
      %p51 = pneg %p45
      %p52 = scmp.eq.s32.totalorder %s10, 1
      %p53 = por %p51, %p52
      %p54 = scmp.ne.s32.totalorder %s46, %s49
      %p55 = scmp.eq.s32.totalorder %s10, 0
      %p56 = por %p54, %p55
      %p57 = scmp.ne.s32.totalorder %s46, %s49
      %p58 = scmp.eq.s32.totalorder %s15, 1
      %p59 = por %p57, %p58
      %p60 = scmp.ne.s32.totalorder %s49, %s50
      %p61 = scmp.eq.s32.totalorder %s15, 0
      %p62 = por %p60, %p61
      %p63 = scmp.ne.s32.totalorder %s49, %s50
      %p64 = scmp.eq.s32.totalorder %s16, 1
      %p65 = por %p63, %p64
      %p67 = scmp.ne.s32.totalorder %s50, %s66
      %p68 = scmp.eq.s32.totalorder %s16, 0
      %p69 = por %p67, %p68
      %p70 = scmp.le.s32.totalorder 1, %s10
      %p71 = scmp.lt.s32.totalorder %s10, 3
      %p72 = pnand %p70, %p71
      %p73 = pneg %p72
      // Predicated region
      $region9: #{tpu_custom_call.1} parent=5 // pred_check
        _
      $region10: #{tpu_custom_call.1} parent=5 // pred_check_branch
        %75 = sbr.rel (%p72) target = $region12
      $region11: #{tpu_custom_call.1} parent=5 // pred_region
        %s76 = ssub.s32 %s10, 1
      $region12: #{tpu_custom_call.1} parent=5 // pred_fallthru
        _
      %p77 = scmp.lt.s32.totalorder %s10, 2
      // Predicated region
      $region13: #{tpu_custom_call.1} parent=5 // pred_check
        %p78 = pneg %p77
      $region14: #{tpu_custom_call.1} parent=5 // pred_check_branch
        %80 = sbr.rel (%p78) target = $region16
      $region15: #{tpu_custom_call.1} parent=5 // pred_region
        // Predicated region
        $region17: #{tpu_custom_call.1} parent=15 // pred_check
          %p81 = pneg %p30
        $region18: #{tpu_custom_call.1} parent=15 // pred_check_branch
          %83 = sbr.rel (%p81) target = $region20
        $region19: #{tpu_custom_call.1} parent=15 // pred_region
          %p84 = scmp.lt.s32.totalorder %s10, 1
          %s85 = scalar_select %p84, %s10, 1
          %s86 = smul.addr %s85, 2
          %s87 = smul.addr %s86, 8
          %s88 = scalar_lea.vmem %s0, %s87
        $region20: #{tpu_custom_call.1} parent=15 // pred_fallthru
          _
      $region16: #{tpu_custom_call.1} parent=5 // pred_fallthru
        _
      %p89 = scmp.le.s32.totalorder 1, %s10
      %p90 = scmp.lt.s32.totalorder %s10, 3
      %p91 = pnand %p89, %p90
      %p92 = pneg %p91
      // Predicated region
      $region21: #{tpu_custom_call.1} parent=5 // pred_check
        _
      $region22: #{tpu_custom_call.1} parent=5 // pred_check_branch
        %94 = sbr.rel (%p91) target = $region24
      $region23: #{tpu_custom_call.1} parent=5 // pred_region
        %s95 = ssub.s32 %s10, 1
        %p96 = scmp.lt.s32.totalorder %s15, 1
        %s97 = scalar_select %p96, %s15, 1
        %s98 = smul.addr %s97, 2
        %s99 = smul.addr %s98, 8
        %s100 = scalar_lea.vmem %s0, %s99
        %p101 = pneg %p36
        %p102 = pneg %p33
        %p103 = pneg %p62
        %p104 = pneg %p59
        %s105 = sand.u32 %s49, 1
        %s106 = scalar_lea.sflag [#allocation3], %s105
        %s107 = sand.u32 %s49, 1
        %s108 = smul.addr %s107, 16
        %s109 = scalar_lea.vmem [#allocation2], %s108
        %p110 = scmp.lt.s32.totalorder %s15, 1
        %s111 = scalar_select %p110, %s15, 1
        %s112 = smul.addr %s111, 2
        %s113 = smul.addr %s112, 8
        %s114 = scalar_lea.vmem %s0, %s113
        %v115 = vld [vmem:[%s114] sm:$0xff]
        %v116 = vld [vmem:[%s114 + $0x8] sm:$0xff]
        %vm117 = vcmask 64512
        %v119 = vsel %vm117, %v115, 0
        %v122 = vsel %vm117, %v116, 0
        %124 = vmatprep.subr.mxu0 0.0
        %125 = vmatpush1.xpose.msra.mxu0 %v119
        %126 = vmatprep.subr.mxu0 0.0
        %127 = vmatpush1.xpose.msra.mxu0 %v122
        %128 = vmatprep.subr.mxu0 0.0
        %129 = vmatpush1.xpose.msra.mxu0 0.0
        %130 = vmatprep.subr.mxu0 0.0
        %131 = vmatpush1.xpose.msra.mxu0 0.0
        %132 = vmatprep.subr.mxu0 0.0
        %133 = vmatpush1.xpose.msra.mxu0 0.0
        %134 = vmatprep.subr.mxu0 0.0
        %135 = vmatpush1.xpose.msra.mxu0 0.0
        %136 = vmatprep.subr.mxu0 0.0
        %137 = vmatpush1.xpose.msra.mxu0 0.0
        %138 = vmatprep.subr.mxu0 0.0
        %139 = vmatpush1.xpose.msra.mxu0 0.0
        %140 = vmatprep.subr.mxu0 0.0
        %141 = vmatpush1.xpose.msra.mxu0 0.0
        %142 = vmatprep.subr.mxu0 0.0
        %143 = vmatpush1.xpose.msra.mxu0 0.0
        %144 = vmatprep.subr.mxu0 0.0
        %145 = vmatpush1.xpose.msra.mxu0 0.0
        %146 = vmatprep.subr.mxu0 0.0
        %147 = vmatpush1.xpose.msra.mxu0 0.0
        %148 = vmatprep.subr.mxu0 0.0
        %149 = vmatpush1.xpose.msra.mxu0 0.0
        %150 = vmatprep.subr.mxu0 0.0
        %151 = vmatpush1.xpose.msra.mxu0 0.0
        %152 = vmatprep.subr.mxu0 0.0
        %153 = vmatpush1.xpose.msra.mxu0 0.0
        %154 = vmatprep.subr.mxu0 0.0
        %155 = vmatpush1.xpose.msra.mxu0 0.0
        %156 = vmatprep.subr.mxu0 0.0
        %157 = vmatpush1.xpose.msra.mxu0 0.0
        %158 = vmatprep.subr.mxu0 0.0
        %159 = vmatpush1.xpose.msra.mxu0 0.0
        %160 = vmatprep.subr.mxu0 0.0
        %161 = vmatpush1.xpose.msra.mxu0 0.0
        %162 = vmatprep.subr.mxu0 0.0
        %163 = vmatpush1.xpose.msra.mxu0 0.0
        %164 = vmatprep.subr.mxu0 0.0
        %165 = vmatpush1.xpose.msra.mxu0 0.0
        %166 = vmatprep.subr.mxu0 0.0
        %167 = vmatpush1.xpose.msra.mxu0 0.0
        %168 = vmatprep.subr.mxu0 0.0
        %169 = vmatpush1.xpose.msra.mxu0 0.0
        %170 = vmatprep.subr.mxu0 0.0
        %171 = vmatpush1.xpose.msra.mxu0 0.0
        %172 = vmatprep.subr.mxu0 0.0
        %173 = vmatpush1.xpose.msra.mxu0 0.0
        %174 = vmatprep.subr.mxu0 0.0
        %175 = vmatpush1.xpose.msra.mxu0 0.0
        %176 = vmatprep.subr.mxu0 0.0
        %177 = vmatpush1.xpose.msra.mxu0 0.0
        %178 = vmatprep.subr.mxu0 0.0
        %179 = vmatpush1.xpose.msra.mxu0 0.0
        %180 = vmatprep.subr.mxu0 0.0
        %181 = vmatpush1.xpose.msra.mxu0 0.0
        %182 = vmatprep.subr.mxu0 0.0
        %183 = vmatpush1.xpose.msra.mxu0 0.0
        %184 = vmatprep.subr.mxu0 0.0
        %185 = vmatpush1.xpose.msra.mxu0 0.0
        %186 = vmatprep.subr.mxu0 0.0
        %187 = vmatpush1.xpose.msra.mxu0 0.0
        %188 = vmatprep.mubr.f32.mxu0 0.0
        %189 = vmatmul.mubr.f32.gmra.mrb[0].mxu0 %v119
        %v190 = vpop.f32.mrb[0].mxu0
        %v191 = vadd.f32 0.0, %v190
        %v192 = vpop.f32.mrb[0].mxu0
        %193 = vmatprep.mubr.f32.mxu0 0.0
        %194 = vmatmul.mubr.f32.gmra.mrb[0].mxu0 %v122
        %v195 = vpop.f32.mrb[0].mxu0
        %v196 = vadd.f32 0.0, %v195
        %v197 = vpop.f32.mrb[0].mxu0
        %198 = vdwg.mxu0
        %v199 = vlaneseq
        %v200 = vshrl.u32 %v199, 7
        %v201 = vadd.s32 %v200, 8
        %v202 = vlaneseq
        %v203 = vand.u32 %v202, 127
        %vm204 = vcmp.eq.s32.totalorder %v200, %v203
        %vm205 = vcmp.eq.s32.totalorder %v201, %v203
        %v206 = vsub.f32 %v191, 1e+08
        %v207 = vsub.f32 %v196, 1e+08
        %v208 = vsel %vm204, %v206, %v191
        %v209 = vsel %vm205, %v207, %v196
        %vm210 = vcmp.ge.f32.partialorder %v208, 0.0
        %vm211 = vcmp.ge.f32.partialorder %v209, 0.0
        %v212 = vmul.f32 %v208, 0.01
        %v213 = vmul.f32 %v209, 0.01
        %v214 = vsel %vm210, %v208, %v212
        %v215 = vsel %vm211, %v209, %v213
        %vm216 = vcmask 130048
        %v217 = vsel %vm216, %v214, -inf
        %218 = vmax.xlane.f32.xlu0 %v217
        %v219 = vpop.xlane.xlu0 %218
        %v220 = vsel %vm216, %v215, -inf
        %221 = vmax.xlane.f32.xlu0 %v220
        %v222 = vpop.xlane.xlu0 %221
        %v223 = vsub.f32 %v214, %v219
        %v224 = vsub.f32 %v215, %v222
        %v225 = vmul.f32 %v223, 1.442695
        %v226 = vpow.pop %v225
        %v227 = vmul.f32 %v224, 1.442695
        %v228 = vpow.pop %v227
        %v229 = vsel %vm216, %v226, 0.0
        %230 = vadd.xlane.f32.xlu0 %v229
        %v231 = vpop.xlane.xlu0 %230
        %v232 = vsel %vm216, %v228, 0.0
        %233 = vadd.xlane.f32.xlu0 %v232
        %v234 = vpop.xlane.xlu0 %233
        %v235 = vrcp.pop %v231
        %v236 = vmul.f32 %v226, %v235
        %v237 = vrcp.pop %v234
        %v238 = vmul.f32 %v228, %v237
        %v239 = vadd.f32 %v236, 1.0
        %v240 = vadd.f32 %v238, 1.0
        %v241 = vsel %vm204, %v239, %v236
        %v242 = vsel %vm205, %v240, %v238
        %243 = vst.msk [vmem:[%s109] sm:$0xff] %vm216, %v241
        %244 = vst.msk [vmem:[%s109 + $0x8] sm:$0xff] %vm216, %v242
        %s245 = sand.u32 %s49, 1
        %s246 = scalar_lea.sflag [#allocation3], %s245
        %s247 = sand.u32 %s49, 1
        %s248 = smul.addr %s247, 16
        %s249 = scalar_lea.vmem [#allocation2], %s248
        // Predicated region
        $region25: #{tpu_custom_call.1} parent=23 // pred_check
          %p250 = pneg %p59
        $region26: #{tpu_custom_call.1} parent=23 // pred_check_branch
          %252 = sbr.rel (%p250) target = $region28
        $region27: #{tpu_custom_call.1} parent=23 // pred_region
          %s254 = ssub.s32 256, 256
          %255 = vsyncadd %s246, %s254
          %s256 = smul.addr %s15, 2
          %s257 = smul.addr %s256, 128
          %s258 = scalar_lea.hbm %s1, %s257
          %s259 = sshll.u32 %s249, 4
          %s260 = int_to_ptr.vmem [resolvable:$true] %s259
          %265 = dma.vmem_to_hbm [thread:$0]  %s260, 256, %s258, %s246, 128, 128, 8
        $region28: #{tpu_custom_call.1} parent=23 // pred_fallthru
          _
      $region24: #{tpu_custom_call.1} parent=5 // pred_fallthru
        _
      %p266 = scmp.le.s32.totalorder 2, %s10
      // Predicated region
      $region29: #{tpu_custom_call.1} parent=5 // pred_check
        %p267 = pneg %p266
      $region30: #{tpu_custom_call.1} parent=5 // pred_check_branch
        %269 = sbr.rel (%p267) target = $region32
      $region31: #{tpu_custom_call.1} parent=5 // pred_region
        %s270 = ssub.s32 %s10, 2
        // Predicated region
        $region33: #{tpu_custom_call.1} parent=31 // pred_check
          %p271 = pneg %p65
        $region34: #{tpu_custom_call.1} parent=31 // pred_check_branch
          %273 = sbr.rel (%p271) target = $region36
        $region35: #{tpu_custom_call.1} parent=31 // pred_region
          %s274 = sand.u32 %s50, 1
          %s275 = scalar_lea.sflag [#allocation3], %s274
          %s276 = sand.u32 %s50, 1
          %s277 = smul.addr %s276, 16
          %s278 = scalar_lea.vmem [#allocation2], %s277
          %279 = dma.done %s275, 256
        $region36: #{tpu_custom_call.1} parent=31 // pred_fallthru
          _
      $region32: #{tpu_custom_call.1} parent=5 // pred_fallthru
        _
    $region6: #{tpu_custom_call.1} parent=1 // loop_footer
      %s14 = sadd.s32 1, %s10
    $region7: #{tpu_custom_call.1} parent=1 // loop_footer_branch
      %9 = sbr.rel target = $region3
    $region8: #{tpu_custom_call.1} parent=1 // loop_exit
      _
    %280 = vsyncpa [#allocation3], 1
    %s281 = scalar_lea.sflag [#allocation3], 1
    %282 = vsyncpa %s281, 1

</llo_original>
